<compile_context>
chip_gen: v7x
topology: tpu7x:2x2x1
jax: 0.10.0
libtpu: 0.0.40
codegen_flags: <defaults>
</compile_context>

<pallas_src>
import functools
import math

import numpy as np
import jax
import jax.numpy as jnp
from jax import lax
from jax.experimental import pallas as pl
from jax.experimental.pallas import tpu as pltpu


# ----------------------------------------------------------------------------------
# Deterministic wavelet-kernel construction (pure numpy, same math as the PyTorch code)
# ----------------------------------------------------------------------------------
def gabor_square(sigma, theta, lambd, gamma, ksize, psi):
    sigma_x = sigma
    sigma_y = float(sigma) / gamma
    xmax = int(ksize[0] / 2)
    ymax = int(ksize[1] / 2)
    xmax = np.ceil(max(1, xmax))
    ymax = np.ceil(max(1, ymax))
    xmin = -xmax
    ymin = -ymax
    x, y = np.meshgrid(np.arange(ymin, ymax + 1), np.arange(xmin, xmax + 1))
    x_theta = x * np.cos(theta) + y * np.sin(theta)
    y_theta = -x * np.sin(theta) + y * np.cos(theta)
    gabor_triangle = np.zeros([ksize[0], ksize[1]])
    if psi == 0:
        for j in range(0, 30, 1):
            gabor_triangle = gabor_triangle + 4 / math.pi * (1 / (2 * j + 1)) * np.cos(
                2 * np.pi / lambd * (2 * j + 1) * x_theta + j * math.pi)
    if psi == 1:
        for j in range(0, 30, 1):
            gabor_triangle = gabor_triangle + (-4) / math.pi * (1 / (2 * j + 1)) * np.cos(
                2 * np.pi / lambd * (2 * j + 1) * x_theta + math.pi / 2)
    gb = np.exp(-0.5 * (x_theta ** 2 / sigma_x ** 2 + y_theta ** 2 / sigma_y ** 2)) * gabor_triangle
    return gb


def get_wavelet_bank(sigma, lambd, gamm, kernel_size, parity):
    """Per-orientation 2-D taps, shape (12, KH, KW) float32.

    The PyTorch module replicates each tap over all 12 input channels; since the conv
    then sums over input channels, only the 2-D tap per orientation is needed here
    (the replication is folded algebraically in the wrapper)."""
    theta = [0, 30, 60, 90, 120, 150, 180, 210, 240, 270, 300, 330]
    psi = 1 if parity == 1 else 0
    kernels = []
    for t in theta:
        k = gabor_square(ksize=kernel_size, sigma=sigma,
                         theta=t * math.pi / 180 * 2, lambd=lambd, gamma=gamm, psi=psi)
        pos_sum = float(np.sum(np.where(k > 0, k, 0)))
        assert abs(pos_sum) > 1e-8, "wavelet normalizer ~0 -> inf/nan weights"
        kernels.append(k / pos_sum)
    return np.array(kernels, dtype=np.float32)  # (12, KH, KW)


# ----------------------------------------------------------------------------------
# Fused Pallas kernel: zero-halo build + single-channel dilated conv (stride 1)
# ----------------------------------------------------------------------------------
def _wavelet_block_kernel(keff_ref, bmap_ref, x_ref, o_ref, pad_ref,
                          *, NB, KH, KW, dil, pad, H, W, Ho, Wo):
    # keff_ref: SMEM (KH*KW,)   f32 — effective taps, already scaled by A (affine fold)
    # bmap_ref: VMEM (Ho, Wacc) f32 — precomputed B-contribution map (constant block index,
    #                                 DMA'd once; exact "affine-before-zero-pad" semantics)
    # x_ref:    VMEM (NB, H, W)     — NB unpadded single-channel images (W on lanes)
    # o_ref:    VMEM (NB, Ho, Wo)
    # pad_ref:  VMEM (Hp, NB*Wp) f32 scratch — NB images packed along lanes, each inside
    #                                 its own zero halo
    Wp = W + 2 * pad
    Wacc = (NB - 1) * Wp + Wo

    # Build the zero halo in VMEM (the wrapper no longer does an HBM jnp.pad pass).
    # Re-zeroed every step: the grid axis is "parallel" so each core owns its own scratch
    # and a one-time pl.when(program_id==0) init would be unsafe.  One VMEM memset pass
    # vs. the 25-tap FMA loop is negligible.
    pad_ref[...] = jnp.zeros_like(pad_ref)
    for n in range(NB):  # static -> unrolled; NB is small
        pad_ref[pad:pad + H, n * Wp + pad:n * Wp + pad + W] = x_ref[n].astype(jnp.float32)
    zp = pad_ref[...]                                   # (Hp, NB*Wp)

    # Pure VPU shifted-FMA over the KHxKW taps (no MXU, no per-tap matmul drain).
    # Taps never cross an image boundary: max column reach is dil*(KW-1) == Wp - Wo.
    # TODO(synk): v6e follow-up — pre-roll KW column-shifted copies (pltpu.roll) to move
    # the per-tap lane rotates off the XLU if it ever co-binds with VALU.
    acc = bmap_ref[...]                                 # start from the folded-B map
    for i in range(KH):                                 # static -> fully unrolled
        rows_i = zp[i * dil:i * dil + Ho, :]
        for j in range(KW):
            acc = acc + keff_ref[i * KW + j] * rows_i[:, j * dil:j * dil + Wacc]

    for n in range(NB):
        o_ref[n] = acc[:, n * Wp:n * Wp + Wo].astype(o_ref.dtype)


def _pick_images_per_step(N, H, W, pad, dil, KH, KW, budget_bytes=8 << 20):
    """Largest divisor of N whose per-step VMEM footprint (double-buffered in/out blocks
    + packed padded scratch + resident bias map) fits a conservative budget."""
    Hp, Wp = H + 2 * pad, W + 2 * pad
    Ho, Wo = Hp - dil * (KH - 1), Wp - dil * (KW - 1)
    best = 1
    for nb in range(1, N + 1):
        if N % nb:
            continue
        wacc = (nb - 1) * Wp + Wo
        need = (2 * nb * H * W + 2 * nb * Ho * Wo + Hp * nb * Wp + 2 * Ho * wacc) * 4
        if need <= budget_bytes and nb * Wp <= 4096:
            best = nb
    return best


def wavelet_block_apply(params, x_nchw, *, kernel_size, dilation, padding, stride=1):
    """Forward of Wavelet_block.  x_nchw: (N, 1, H, W) NCHW -> (N, 1, Ho, Wo) float32.

    bf16 (or other) input dtypes are accepted; the kernel upcasts to f32 for accumulation."""
    # TODO(synk): stride > 1 is accepted by the PyTorch constructor but the block is only
    # used with stride 1; strided output indexing is not implemented here.
    assert stride == 1
    N, C, H, W = x_nchw.shape
    assert C == 1
    KH, KW = kernel_size
    dil = int(dilation)
    pad = int(padding)
    Hp, Wp = H + 2 * pad, W + 2 * pad
    Ho = Hp - dil * (KH - 1)
    Wo = Wp - dil * (KW - 1)
    assert Ho >= 1 and Wo >= 1

    # ---- algebraic fold of all six convs (exact up to f32 reassociation) ----
    b1 = params["bias1_b"]          # (6,)  bias1 bias (weight fixed to ones)
    w2 = params["bias2_w"]          # (12,) grouped 1x1 weight
    b2 = params["bias2_b"]          # (12,)
    lo = params["last_odd_w"]       # (12,) last_conv_odd 1x1
    le = params["last_even_w"]      # (12,) last_conv_even 1x1
    lw = params["last_w"]           # (2,)  last_conv 1x1
    A = jnp.sum(w2)
    B = jnp.sum(w2 * jnp.repeat(b1, 2)) + jnp.sum(b2)
    k_eff = (lw[0] * jnp.sum(lo[:, None, None] * params["k_odd"], axis=0)
             + lw[1] * jnp.sum(le[:, None, None] * params["k_even"], axis=0))  # (KH, KW)
    k_eff = k_eff.astype(jnp.float32)

    # Affine fold, part 1: conv is linear, so fold A into the taps (no per-step A*x mul).
    keff_scaled = (A * k_eff).reshape(KH * KW).astype(jnp.float32)

    # Affine fold, part 2: B-contribution map = B * conv(interior_mask, k_eff).
    # Keeps the exact "affine BEFORE zero padding" interior-mask semantics.  This is a
    # tiny (Ho, Wo) precompute (independent of N and of x), not a wrapper pass over x.
    mask = jnp.zeros((Hp, Wp), jnp.float32).at[pad:pad + H, pad:pad + W].set(1.0)
    cov = lax.conv_general_dilated(
        mask[None, None], k_eff[None, None], window_strides=(1, 1),
        padding=[(0, 0), (0, 0)], rhs_dilation=(dil, dil),
        dimension_numbers=("NCHW", "OIHW", "NCHW"),
        precision=lax.Precision.HIGHEST)[0, 0]                     # (Ho, Wo)
    bmap = (B * cov).astype(jnp.float32)

    # Batch NB small images per grid step, packed along the lane axis (each with its own
    # zero halo) for better vreg lane occupancy and amortized per-step overhead.
    NB = _pick_images_per_step(N, H, W, pad, dil, KH, KW)
    Wacc = (NB - 1) * Wp + Wo
    bmap_packed = jnp.tile(jnp.pad(bmap, ((0, 0), (0, Wp - Wo))), (1, NB))[:, :Wacc]

    x = x_nchw[:, 0]                                               # (N, H, W), unpadded

    kernel = functools.partial(_wavelet_block_kernel, NB=NB, KH=KH, KW=KW, dil=dil,
                               pad=pad, H=H, W=W, Ho=Ho, Wo=Wo)
    out = pl.pallas_call(
        kernel,
        out_shape=jax.ShapeDtypeStruct((N, Ho, Wo), jnp.float32),
        grid=(N // NB,),
        in_specs=[
            pl.BlockSpec(memory_space=pltpu.MemorySpace.SMEM),     # taps (A-scaled scalars)
            pl.BlockSpec((Ho, Wacc), lambda n: (0, 0)),            # B map (resident, DMA once)
            pl.BlockSpec((NB, H, W), lambda n: (n, 0, 0)),         # NB unpadded images
        ],
        out_specs=pl.BlockSpec((NB, Ho, Wo), lambda n: (n, 0, 0)),
        scratch_shapes=[pltpu.VMEM((Hp, NB * Wp), jnp.float32)],   # packed padded images
        compiler_params=pltpu.CompilerParams(
            dimension_semantics=("parallel",),
            vmem_limit_bytes=32 * 1024 * 1024),
    )(keff_scaled, bmap_packed, x)
    return out[:, None, :, :]                                      # (N, 1, Ho, Wo)


# ----------------------------------------------------------------------------------
# Parameter init mirroring the PyTorch module's defaults
# ----------------------------------------------------------------------------------
def _uniform(key, shape, bound):
    return jax.random.uniform(key, shape, jnp.float32, minval=-bound, maxval=bound)


def init_wavelet_block_params(key, sigma, lambd, gamm, kernel_size):
    ks = jax.random.split(key, 6)
    return {
        "bias1_b": _uniform(ks[0], (6,), 1.0),                      # Conv2d(1,6,1x1): fan_in=1
        "bias2_w": _uniform(ks[1], (12,), 1.0),                     # grouped 1x1: fan_in=1
        "bias2_b": _uniform(ks[2], (12,), 1.0),
        "last_odd_w": _uniform(ks[3], (12,), 1.0 / math.sqrt(12.0)),
        "last_even_w": _uniform(ks[4], (12,), 1.0 / math.sqrt(12.0)),
        "last_w": _uniform(ks[5], (2,), 1.0 / math.sqrt(2.0)),
        # fixed (non-trainable) wavelet banks
        "k_odd": jnp.asarray(get_wavelet_bank(sigma, lambd, gamm, kernel_size, parity=1)),
        "k_even": jnp.asarray(get_wavelet_bank(sigma, lambd, gamm, kernel_size, parity=0)),
    }


# ----------------------------------------------------------------------------------
# Pure-JAX reference of the UNFUSED module (for a numerical self-check)
# ----------------------------------------------------------------------------------
def wavelet_block_reference(params, x_nchw, *, kernel_size, dilation, padding):
    KH, KW = kernel_size
    x = x_nchw.astype(jnp.float32)                               # (N, 1, H, W)
    b1, w2, b2 = params["bias1_b"], params["bias2_w"], params["bias2_b"]
    y1 = x + b1.reshape(1, 6, 1, 1)                              # bias1 (weight == 1)
    y2 = w2.reshape(1, 12, 1, 1) * y1[:, jnp.arange(12) // 2] + b2.reshape(1, 12, 1, 1)

    def wconv(y, bank):
        w_full = jnp.broadcast_to(bank[:, None], (12, 12, KH, KW))
        return lax.conv_general_dilated(
            y, w_full, window_strides=(1, 1),
            padding=[(padding, padding), (padding, padding)],
            rhs_dilation=(dilation, dilation),
            dimension_numbers=("NCHW", "OIHW", "NCHW"),
            precision=lax.Precision.HIGHEST)

    odd = jnp.sum(params["last_odd_w"].reshape(1, 12, 1, 1) * wconv(y2, params["k_odd"]),
                  axis=1, keepdims=True)
    even = jnp.sum(params["last_even_w"].reshape(1, 12, 1, 1) * wconv(y2, params["k_even"]),
                   axis=1, keepdims=True)
    return params["last_w"][0] * odd + params["last_w"][1] * even


if __name__ == "__main__":
    key = jax.random.PRNGKey(0)
    pkey, xkey = jax.random.split(key)
    x = jax.random.normal(xkey, (2, 1, 16, 16), jnp.float32)      # Wavelet_block takes 1-chan NCHW

    # Tolerance note: the algebraic fold reorders f32 sums over channels / odd-even branches;
    # documented tolerance for inference use.
    RTOL, ATOL = 2e-3, 2e-3

    # Config 1: 5x5 kernel, dilation 1, padding 2 (canonical Wavelet_block instantiation).
    cfg1 = dict(sigma=5, lambd=5.0, gamm=1, kernel_size=(5, 5), dilation=1, padding=2)
    p1 = init_wavelet_block_params(pkey, cfg1["sigma"], cfg1["lambd"], cfg1["gamm"],
                                   cfg1["kernel_size"])
    fwd1 = jax.jit(functools.partial(wavelet_block_apply, kernel_size=cfg1["kernel_size"],
                                     dilation=cfg1["dilation"], padding=cfg1["padding"]))
    out1 = fwd1(p1, x)
    jax.block_until_ready(out1)
    assert out1.shape == (2, 1, 16, 16) and out1.dtype == jnp.float32
    ref1 = wavelet_block_reference(p1, x, kernel_size=cfg1["kernel_size"],
                                   dilation=cfg1["dilation"], padding=cfg1["padding"])
    np.testing.assert_allclose(np.asarray(out1), np.asarray(ref1), rtol=RTOL, atol=ATOL)

    # Config 2: 3x3 kernel, dilation 2, padding 2 (exercises the dilated path).
    cfg2 = dict(sigma=3, lambd=3.0, gamm=1, kernel_size=(3, 3), dilation=2, padding=2)
    p2 = init_wavelet_block_params(pkey, cfg2["sigma"], cfg2["lambd"], cfg2["gamm"],
                                   cfg2["kernel_size"])
    fwd2 = jax.jit(functools.partial(wavelet_block_apply, kernel_size=cfg2["kernel_size"],
                                     dilation=cfg2["dilation"], padding=cfg2["padding"]))
    out2 = fwd2(p2, x)
    jax.block_until_ready(out2)
    assert out2.shape == (2, 1, 16, 16) and out2.dtype == jnp.float32
    ref2 = wavelet_block_reference(p2, x, kernel_size=cfg2["kernel_size"],
                                   dilation=cfg2["dilation"], padding=cfg2["padding"])
    np.testing.assert_allclose(np.asarray(out2), np.asarray(ref2), rtol=RTOL, atol=ATOL)

    print("KERNEL_OK")
</pallas_src>

<mosaic_0001>
module attributes {stable_mosaic.version = 11 : i64} {
  func.func @_wavelet_block_kernel(%arg0: i32, %arg1: memref<25xf32, #tpu.memory_space<smem>>, %arg2: memref<16x36xf32, #tpu.memory_space<vmem>>, %arg3: memref<2x16x16xf32, #tpu.memory_space<vmem>>, %arg4: memref<2x16x16xf32, #tpu.memory_space<vmem>>, %arg5: memref<20x40xf32, #tpu.memory_space<vmem>>) attributes {dimension_semantics = [#tpu.dimension_semantics<parallel>], iteration_bounds = array<i64: 1>, scalar_prefetch = 0 : i64, scratch_operands = 1 : i64, tpu.core_type = #tpu.core_type<tc>, window_params = [{transform_indices = @transform_0, window_bounds = array<i64: 25>}, {pipeline_mode = #tpu.pipeline_mode<synchronous>, transform_indices = @transform_1, window_bounds = array<i64: 16, 36>}, {transform_indices = @transform_2, window_bounds = array<i64: 2, 16, 16>}, {transform_indices = @transform_3, window_bounds = array<i64: 2, 16, 16>}]} {
    %cst = arith.constant 0.000000e+00 : f32
    %0 = vector.broadcast %cst : f32 to vector<20x40xf32>
    %c0 = arith.constant 0 : index
    %c0_0 = arith.constant 0 : index
    %1 = vector.load %arg5[%c0, %c0_0] : memref<20x40xf32, #tpu.memory_space<vmem>>, vector<20x40xf32>
    tpu.vector_store %arg5[%c0, %c0_0], %0 {strides = array<i32>} : memref<20x40xf32, #tpu.memory_space<vmem>>, vector<20x40xf32>,
    %c0_1 = arith.constant 0 : index
    %c0_2 = arith.constant 0 : index
    %c0_3 = arith.constant 0 : index
    %2 = vector.load %arg3[%c0_1, %c0_2, %c0_3] : memref<2x16x16xf32, #tpu.memory_space<vmem>>, vector<1x16x16xf32>
    %3 = vector.shape_cast %2 : vector<1x16x16xf32> to vector<16x16xf32>
    %c2 = arith.constant 2 : index
    %c2_4 = arith.constant 2 : index
    %4 = vector.load %arg5[%c2, %c2_4] : memref<20x40xf32, #tpu.memory_space<vmem>>, vector<16x16xf32>
    tpu.vector_store %arg5[%c2, %c2_4], %3 {strides = array<i32>} : memref<20x40xf32, #tpu.memory_space<vmem>>, vector<16x16xf32>,
    %c1 = arith.constant 1 : index
    %c0_5 = arith.constant 0 : index
    %c0_6 = arith.constant 0 : index
    %5 = vector.load %arg3[%c1, %c0_5, %c0_6] : memref<2x16x16xf32, #tpu.memory_space<vmem>>, vector<1x16x16xf32>
    %6 = vector.shape_cast %5 : vector<1x16x16xf32> to vector<16x16xf32>
    %c2_7 = arith.constant 2 : index
    %c22 = arith.constant 22 : index
    %7 = vector.load %arg5[%c2_7, %c22] : memref<20x40xf32, #tpu.memory_space<vmem>>, vector<16x16xf32>
    tpu.vector_store %arg5[%c2_7, %c22], %6 {strides = array<i32>} : memref<20x40xf32, #tpu.memory_space<vmem>>, vector<16x16xf32>,
    %c0_8 = arith.constant 0 : index
    %c0_9 = arith.constant 0 : index
    %8 = vector.load %arg5[%c0_8, %c0_9] : memref<20x40xf32, #tpu.memory_space<vmem>>, vector<20x40xf32>
    %c0_10 = arith.constant 0 : index
    %c0_11 = arith.constant 0 : index
    %9 = vector.load %arg2[%c0_10, %c0_11] : memref<16x36xf32, #tpu.memory_space<vmem>>, vector<16x36xf32>
    %10 = vector.extract_strided_slice %8 {offsets = [0, 0], sizes = [16, 40], strides = [1, 1]} : vector<20x40xf32> to vector<16x40xf32>
    %c0_12 = arith.constant 0 : index
    %11 = memref.load %arg1[%c0_12] : memref<25xf32, #tpu.memory_space<smem>>
    %12 = vector.extract_strided_slice %10 {offsets = [0, 0], sizes = [16, 36], strides = [1, 1]} : vector<16x40xf32> to vector<16x36xf32>
    %13 = vector.broadcast %11 : f32 to vector<16x36xf32>
    %14 = arith.mulf %13, %12 : vector<16x36xf32>
    %15 = arith.addf %9, %14 : vector<16x36xf32>
    %c1_13 = arith.constant 1 : index
    %16 = memref.load %arg1[%c1_13] : memref<25xf32, #tpu.memory_space<smem>>
    %17 = vector.extract_strided_slice %10 {offsets = [0, 1], sizes = [16, 36], strides = [1, 1]} : vector<16x40xf32> to vector<16x36xf32>
    %18 = vector.broadcast %16 : f32 to vector<16x36xf32>
    %19 = arith.mulf %18, %17 : vector<16x36xf32>
    %20 = arith.addf %15, %19 : vector<16x36xf32>
    %c2_14 = arith.constant 2 : index
    %21 = memref.load %arg1[%c2_14] : memref<25xf32, #tpu.memory_space<smem>>
    %22 = vector.extract_strided_slice %10 {offsets = [0, 2], sizes = [16, 36], strides = [1, 1]} : vector<16x40xf32> to vector<16x36xf32>
    %23 = vector.broadcast %21 : f32 to vector<16x36xf32>
    %24 = arith.mulf %23, %22 : vector<16x36xf32>
    %25 = arith.addf %20, %24 : vector<16x36xf32>
    %c3 = arith.constant 3 : index
    %26 = memref.load %arg1[%c3] : memref<25xf32, #tpu.memory_space<smem>>
    %27 = vector.extract_strided_slice %10 {offsets = [0, 3], sizes = [16, 36], strides = [1, 1]} : vector<16x40xf32> to vector<16x36xf32>
    %28 = vector.broadcast %26 : f32 to vector<16x36xf32>
    %29 = arith.mulf %28, %27 : vector<16x36xf32>
    %30 = arith.addf %25, %29 : vector<16x36xf32>
    %c4 = arith.constant 4 : index
    %31 = memref.load %arg1[%c4] : memref<25xf32, #tpu.memory_space<smem>>
    %32 = vector.extract_strided_slice %10 {offsets = [0, 4], sizes = [16, 36], strides = [1, 1]} : vector<16x40xf32> to vector<16x36xf32>
    %33 = vector.broadcast %31 : f32 to vector<16x36xf32>
    %34 = arith.mulf %33, %32 : vector<16x36xf32>
    %35 = arith.addf %30, %34 : vector<16x36xf32>
    %36 = vector.extract_strided_slice %8 {offsets = [1, 0], sizes = [16, 40], strides = [1, 1]} : vector<20x40xf32> to vector<16x40xf32>
    %c5 = arith.constant 5 : index
    %37 = memref.load %arg1[%c5] : memref<25xf32, #tpu.memory_space<smem>>
    %38 = vector.extract_strided_slice %36 {offsets = [0, 0], sizes = [16, 36], strides = [1, 1]} : vector<16x40xf32> to vector<16x36xf32>
    %39 = vector.broadcast %37 : f32 to vector<16x36xf32>
    %40 = arith.mulf %39, %38 : vector<16x36xf32>
    %41 = arith.addf %35, %40 : vector<16x36xf32>
    %c6 = arith.constant 6 : index
    %42 = memref.load %arg1[%c6] : memref<25xf32, #tpu.memory_space<smem>>
    %43 = vector.extract_strided_slice %36 {offsets = [0, 1], sizes = [16, 36], strides = [1, 1]} : vector<16x40xf32> to vector<16x36xf32>
    %44 = vector.broadcast %42 : f32 to vector<16x36xf32>
    %45 = arith.mulf %44, %43 : vector<16x36xf32>
    %46 = arith.addf %41, %45 : vector<16x36xf32>
    %c7 = arith.constant 7 : index
    %47 = memref.load %arg1[%c7] : memref<25xf32, #tpu.memory_space<smem>>
    %48 = vector.extract_strided_slice %36 {offsets = [0, 2], sizes = [16, 36], strides = [1, 1]} : vector<16x40xf32> to vector<16x36xf32>
    %49 = vector.broadcast %47 : f32 to vector<16x36xf32>
    %50 = arith.mulf %49, %48 : vector<16x36xf32>
    %51 = arith.addf %46, %50 : vector<16x36xf32>
    %c8 = arith.constant 8 : index
    %52 = memref.load %arg1[%c8] : memref<25xf32, #tpu.memory_space<smem>>
    %53 = vector.extract_strided_slice %36 {offsets = [0, 3], sizes = [16, 36], strides = [1, 1]} : vector<16x40xf32> to vector<16x36xf32>
    %54 = vector.broadcast %52 : f32 to vector<16x36xf32>
    %55 = arith.mulf %54, %53 : vector<16x36xf32>
    %56 = arith.addf %51, %55 : vector<16x36xf32>
    %c9 = arith.constant 9 : index
    %57 = memref.load %arg1[%c9] : memref<25xf32, #tpu.memory_space<smem>>
    %58 = vector.extract_strided_slice %36 {offsets = [0, 4], sizes = [16, 36], strides = [1, 1]} : vector<16x40xf32> to vector<16x36xf32>
    %59 = vector.broadcast %57 : f32 to vector<16x36xf32>
    %60 = arith.mulf %59, %58 : vector<16x36xf32>
    %61 = arith.addf %56, %60 : vector<16x36xf32>
    %62 = vector.extract_strided_slice %8 {offsets = [2, 0], sizes = [16, 40], strides = [1, 1]} : vector<20x40xf32> to vector<16x40xf32>
    %c10 = arith.constant 10 : index
    %63 = memref.load %arg1[%c10] : memref<25xf32, #tpu.memory_space<smem>>
    %64 = vector.extract_strided_slice %62 {offsets = [0, 0], sizes = [16, 36], strides = [1, 1]} : vector<16x40xf32> to vector<16x36xf32>
    %65 = vector.broadcast %63 : f32 to vector<16x36xf32>
    %66 = arith.mulf %65, %64 : vector<16x36xf32>
    %67 = arith.addf %61, %66 : vector<16x36xf32>
    %c11 = arith.constant 11 : index
    %68 = memref.load %arg1[%c11] : memref<25xf32, #tpu.memory_space<smem>>
    %69 = vector.extract_strided_slice %62 {offsets = [0, 1], sizes = [16, 36], strides = [1, 1]} : vector<16x40xf32> to vector<16x36xf32>
    %70 = vector.broadcast %68 : f32 to vector<16x36xf32>
    %71 = arith.mulf %70, %69 : vector<16x36xf32>
    %72 = arith.addf %67, %71 : vector<16x36xf32>
    %c12 = arith.constant 12 : index
    %73 = memref.load %arg1[%c12] : memref<25xf32, #tpu.memory_space<smem>>
    %74 = vector.extract_strided_slice %62 {offsets = [0, 2], sizes = [16, 36], strides = [1, 1]} : vector<16x40xf32> to vector<16x36xf32>
    %75 = vector.broadcast %73 : f32 to vector<16x36xf32>
    %76 = arith.mulf %75, %74 : vector<16x36xf32>
    %77 = arith.addf %72, %76 : vector<16x36xf32>
    %c13 = arith.constant 13 : index
    %78 = memref.load %arg1[%c13] : memref<25xf32, #tpu.memory_space<smem>>
    %79 = vector.extract_strided_slice %62 {offsets = [0, 3], sizes = [16, 36], strides = [1, 1]} : vector<16x40xf32> to vector<16x36xf32>
    %80 = vector.broadcast %78 : f32 to vector<16x36xf32>
    %81 = arith.mulf %80, %79 : vector<16x36xf32>
    %82 = arith.addf %77, %81 : vector<16x36xf32>
    %c14 = arith.constant 14 : index
    %83 = memref.load %arg1[%c14] : memref<25xf32, #tpu.memory_space<smem>>
    %84 = vector.extract_strided_slice %62 {offsets = [0, 4], sizes = [16, 36], strides = [1, 1]} : vector<16x40xf32> to vector<16x36xf32>
    %85 = vector.broadcast %83 : f32 to vector<16x36xf32>
    %86 = arith.mulf %85, %84 : vector<16x36xf32>
    %87 = arith.addf %82, %86 : vector<16x36xf32>
    %88 = vector.extract_strided_slice %8 {offsets = [3, 0], sizes = [16, 40], strides = [1, 1]} : vector<20x40xf32> to vector<16x40xf32>
    %c15 = arith.constant 15 : index
    %89 = memref.load %arg1[%c15] : memref<25xf32, #tpu.memory_space<smem>>
    %90 = vector.extract_strided_slice %88 {offsets = [0, 0], sizes = [16, 36], strides = [1, 1]} : vector<16x40xf32> to vector<16x36xf32>
    %91 = vector.broadcast %89 : f32 to vector<16x36xf32>
    %92 = arith.mulf %91, %90 : vector<16x36xf32>
    %93 = arith.addf %87, %92 : vector<16x36xf32>
    %c16 = arith.constant 16 : index
    %94 = memref.load %arg1[%c16] : memref<25xf32, #tpu.memory_space<smem>>
    %95 = vector.extract_strided_slice %88 {offsets = [0, 1], sizes = [16, 36], strides = [1, 1]} : vector<16x40xf32> to vector<16x36xf32>
    %96 = vector.broadcast %94 : f32 to vector<16x36xf32>
    %97 = arith.mulf %96, %95 : vector<16x36xf32>
    %98 = arith.addf %93, %97 : vector<16x36xf32>
    %c17 = arith.constant 17 : index
    %99 = memref.load %arg1[%c17] : memref<25xf32, #tpu.memory_space<smem>>
    %100 = vector.extract_strided_slice %88 {offsets = [0, 2], sizes = [16, 36], strides = [1, 1]} : vector<16x40xf32> to vector<16x36xf32>
    %101 = vector.broadcast %99 : f32 to vector<16x36xf32>
    %102 = arith.mulf %101, %100 : vector<16x36xf32>
    %103 = arith.addf %98, %102 : vector<16x36xf32>
    %c18 = arith.constant 18 : index
    %104 = memref.load %arg1[%c18] : memref<25xf32, #tpu.memory_space<smem>>
    %105 = vector.extract_strided_slice %88 {offsets = [0, 3], sizes = [16, 36], strides = [1, 1]} : vector<16x40xf32> to vector<16x36xf32>
    %106 = vector.broadcast %104 : f32 to vector<16x36xf32>
    %107 = arith.mulf %106, %105 : vector<16x36xf32>
    %108 = arith.addf %103, %107 : vector<16x36xf32>
    %c19 = arith.constant 19 : index
    %109 = memref.load %arg1[%c19] : memref<25xf32, #tpu.memory_space<smem>>
    %110 = vector.extract_strided_slice %88 {offsets = [0, 4], sizes = [16, 36], strides = [1, 1]} : vector<16x40xf32> to vector<16x36xf32>
    %111 = vector.broadcast %109 : f32 to vector<16x36xf32>
    %112 = arith.mulf %111, %110 : vector<16x36xf32>
    %113 = arith.addf %108, %112 : vector<16x36xf32>
    %114 = vector.extract_strided_slice %8 {offsets = [4, 0], sizes = [16, 40], strides = [1, 1]} : vector<20x40xf32> to vector<16x40xf32>
    %c20 = arith.constant 20 : index
    %115 = memref.load %arg1[%c20] : memref<25xf32, #tpu.memory_space<smem>>
    %116 = vector.extract_strided_slice %114 {offsets = [0, 0], sizes = [16, 36], strides = [1, 1]} : vector<16x40xf32> to vector<16x36xf32>
    %117 = vector.broadcast %115 : f32 to vector<16x36xf32>
    %118 = arith.mulf %117, %116 : vector<16x36xf32>
    %119 = arith.addf %113, %118 : vector<16x36xf32>
    %c21 = arith.constant 21 : index
    %120 = memref.load %arg1[%c21] : memref<25xf32, #tpu.memory_space<smem>>
    %121 = vector.extract_strided_slice %114 {offsets = [0, 1], sizes = [16, 36], strides = [1, 1]} : vector<16x40xf32> to vector<16x36xf32>
    %122 = vector.broadcast %120 : f32 to vector<16x36xf32>
    %123 = arith.mulf %122, %121 : vector<16x36xf32>
    %124 = arith.addf %119, %123 : vector<16x36xf32>
    %c22_15 = arith.constant 22 : index
    %125 = memref.load %arg1[%c22_15] : memref<25xf32, #tpu.memory_space<smem>>
    %126 = vector.extract_strided_slice %114 {offsets = [0, 2], sizes = [16, 36], strides = [1, 1]} : vector<16x40xf32> to vector<16x36xf32>
    %127 = vector.broadcast %125 : f32 to vector<16x36xf32>
    %128 = arith.mulf %127, %126 : vector<16x36xf32>
    %129 = arith.addf %124, %128 : vector<16x36xf32>
    %c23 = arith.constant 23 : index
    %130 = memref.load %arg1[%c23] : memref<25xf32, #tpu.memory_space<smem>>
    %131 = vector.extract_strided_slice %114 {offsets = [0, 3], sizes = [16, 36], strides = [1, 1]} : vector<16x40xf32> to vector<16x36xf32>
    %132 = vector.broadcast %130 : f32 to vector<16x36xf32>
    %133 = arith.mulf %132, %131 : vector<16x36xf32>
    %134 = arith.addf %129, %133 : vector<16x36xf32>
    %c24 = arith.constant 24 : index
    %135 = memref.load %arg1[%c24] : memref<25xf32, #tpu.memory_space<smem>>
    %136 = vector.extract_strided_slice %114 {offsets = [0, 4], sizes = [16, 36], strides = [1, 1]} : vector<16x40xf32> to vector<16x36xf32>
    %137 = vector.broadcast %135 : f32 to vector<16x36xf32>
    %138 = arith.mulf %137, %136 : vector<16x36xf32>
    %139 = arith.addf %134, %138 : vector<16x36xf32>
    %140 = vector.extract_strided_slice %139 {offsets = [0, 0], sizes = [16, 16], strides = [1, 1]} : vector<16x36xf32> to vector<16x16xf32>
    %c0_16 = arith.constant 0 : index
    %c0_17 = arith.constant 0 : index
    %c0_18 = arith.constant 0 : index
    %141 = vector.load %arg4[%c0_16, %c0_17, %c0_18] : memref<2x16x16xf32, #tpu.memory_space<vmem>>, vector<1x16x16xf32>
    %142 = vector.shape_cast %141 : vector<1x16x16xf32> to vector<16x16xf32>
    %143 = vector.shape_cast %140 : vector<16x16xf32> to vector<1x16x16xf32>
    tpu.vector_store %arg4[%c0_16, %c0_17, %c0_18], %143 {strides = array<i32>} : memref<2x16x16xf32, #tpu.memory_space<vmem>>, vector<1x16x16xf32>,
    %144 = vector.extract_strided_slice %139 {offsets = [0, 20], sizes = [16, 16], strides = [1, 1]} : vector<16x36xf32> to vector<16x16xf32>
    %c1_19 = arith.constant 1 : index
    %c0_20 = arith.constant 0 : index
    %c0_21 = arith.constant 0 : index
    %145 = vector.load %arg4[%c1_19, %c0_20, %c0_21] : memref<2x16x16xf32, #tpu.memory_space<vmem>>, vector<1x16x16xf32>
    %146 = vector.shape_cast %145 : vector<1x16x16xf32> to vector<16x16xf32>
    %147 = vector.shape_cast %144 : vector<16x16xf32> to vector<1x16x16xf32>
    tpu.vector_store %arg4[%c1_19, %c0_20, %c0_21], %147 {strides = array<i32>} : memref<2x16x16xf32, #tpu.memory_space<vmem>>, vector<1x16x16xf32>,
    return
  }
  func.func @transform_0(%arg0: i32) -> i32 {
    %c0_i32 = arith.constant 0 : i32
    %c0_i32_0 = arith.constant 0 : i32
    return %c0_i32 : i32
  }
  func.func @transform_1(%arg0: i32) -> (i32, i32) {
    %c0_i32 = arith.constant 0 : i32
    %c0_i32_0 = arith.constant 0 : i32
    %c0_i32_1 = arith.constant 0 : i32
    return %c0_i32, %c0_i32_0 : i32, i32
  }
  func.func @transform_2(%arg0: i32) -> (i32, i32, i32) {
    %c0_i32 = arith.constant 0 : i32
    %c0_i32_0 = arith.constant 0 : i32
    %c0_i32_1 = arith.constant 0 : i32
    return %arg0, %c0_i32, %c0_i32_0 : i32, i32, i32
  }
  func.func @transform_3(%arg0: i32) -> (i32, i32, i32) {
    %c0_i32 = arith.constant 0 : i32
    %c0_i32_0 = arith.constant 0 : i32
    %c0_i32_1 = arith.constant 0 : i32
    return %arg0, %c0_i32, %c0_i32_0 : i32, i32, i32
  }
}

</mosaic_0001>

<llo_original>
// kernel: tile.9
$region0: #{tile.9}
  %s0 = inlined_call_operand.vmem [shape: f32[16,2,20], index: 0, kind: input, shape index: {}]
  %s1 = inlined_call_operand.vmem [shape: f32[16,40], index: 1, kind: output, shape index: {}]
  $region1: #{tile.9} parent=0
    #allocation0 [shape = 'u8[65536]{0}', space=vmem, size = 0x10000, scoped, tag = 'scoped mem for input reshape']
    %s3 = sshllo.u32 0, 2
    %s4 = smul.addr 2, 15
    %s5 = scalar_lea.vmem %s0, %s4
    %v6 = vld [vmem:[%s5] sm:%s3]
    %s7 = scalar_lea.vmem [#allocation0], 120
    %8 = vst [vmem:[%s7] sm:%s3] %v6
    %s9 = smul.addr 2, 14
    %s10 = scalar_lea.vmem %s0, %s9
    %v11 = vld [vmem:[%s10] sm:%s3]
    %s12 = scalar_lea.vmem [#allocation0], 112
    %13 = vst [vmem:[%s12] sm:%s3] %v11
    %s14 = smul.addr 2, 13
    %s15 = scalar_lea.vmem %s0, %s14
    %v16 = vld [vmem:[%s15] sm:%s3]
    %s17 = scalar_lea.vmem [#allocation0], 104
    %18 = vst [vmem:[%s17] sm:%s3] %v16
    %s19 = smul.addr 2, 12
    %s20 = scalar_lea.vmem %s0, %s19
    %v21 = vld [vmem:[%s20] sm:%s3]
    %s22 = scalar_lea.vmem [#allocation0], 96
    %23 = vst [vmem:[%s22] sm:%s3] %v21
    %s24 = smul.addr 2, 11
    %s25 = scalar_lea.vmem %s0, %s24
    %v26 = vld [vmem:[%s25] sm:%s3]
    %s27 = scalar_lea.vmem [#allocation0], 88
    %28 = vst [vmem:[%s27] sm:%s3] %v26
    %s29 = smul.addr 2, 10
    %s30 = scalar_lea.vmem %s0, %s29
    %v31 = vld [vmem:[%s30] sm:%s3]
    %s32 = scalar_lea.vmem [#allocation0], 80
    %33 = vst [vmem:[%s32] sm:%s3] %v31
    %s34 = smul.addr 2, 9
    %s35 = scalar_lea.vmem %s0, %s34
    %v36 = vld [vmem:[%s35] sm:%s3]
    %s37 = scalar_lea.vmem [#allocation0], 72
    %38 = vst [vmem:[%s37] sm:%s3] %v36
    %s39 = smul.addr 2, 8
    %s40 = scalar_lea.vmem %s0, %s39
    %v41 = vld [vmem:[%s40] sm:%s3]
    %s42 = scalar_lea.vmem [#allocation0], 64
    %43 = vst [vmem:[%s42] sm:%s3] %v41
    %s44 = smul.addr 2, 7
    %s45 = scalar_lea.vmem %s0, %s44
    %v46 = vld [vmem:[%s45] sm:%s3]
    %s47 = scalar_lea.vmem [#allocation0], 56
    %48 = vst [vmem:[%s47] sm:%s3] %v46
    %s49 = smul.addr 2, 6
    %s50 = scalar_lea.vmem %s0, %s49
    %v51 = vld [vmem:[%s50] sm:%s3]
    %s52 = scalar_lea.vmem [#allocation0], 48
    %53 = vst [vmem:[%s52] sm:%s3] %v51
    %s54 = smul.addr 2, 5
    %s55 = scalar_lea.vmem %s0, %s54
    %v56 = vld [vmem:[%s55] sm:%s3]
    %s57 = scalar_lea.vmem [#allocation0], 40
    %58 = vst [vmem:[%s57] sm:%s3] %v56
    %s59 = smul.addr 2, 4
    %s60 = scalar_lea.vmem %s0, %s59
    %v61 = vld [vmem:[%s60] sm:%s3]
    %s62 = scalar_lea.vmem [#allocation0], 32
    %63 = vst [vmem:[%s62] sm:%s3] %v61
    %s64 = smul.addr 2, 3
    %s65 = scalar_lea.vmem %s0, %s64
    %v66 = vld [vmem:[%s65] sm:%s3]
    %s67 = scalar_lea.vmem [#allocation0], 24
    %68 = vst [vmem:[%s67] sm:%s3] %v66
    %s69 = smul.addr 2, 2
    %s70 = scalar_lea.vmem %s0, %s69
    %v71 = vld [vmem:[%s70] sm:%s3]
    %s72 = scalar_lea.vmem [#allocation0], 16
    %73 = vst [vmem:[%s72] sm:%s3] %v71
    %s74 = scalar_lea.vmem %s0, 2
    %v75 = vld [vmem:[%s74] sm:%s3]
    %s76 = scalar_lea.vmem [#allocation0], 8
    %77 = vst [vmem:[%s76] sm:%s3] %v75
    %v78 = vld [vmem:[%s0] sm:%s3]
    %79 = vst [vmem:[#allocation0] sm:%s3] %v78
    %v80 = vld [vmem:[#allocation0] ss:$8 sm:$0xf]
    %v81 = vld [vmem:[#allocation0] ss:$8 sm:$0xf0]
    %vm82 = vcmask 1047556
    %v83 = vsel %vm82, %v81, %v80
    %vm84 = vcmask 162816
    %85 = vst.msk [vmem:[%s1] sm:$0xff] %vm84, %v83
    %s86 = scalar_lea.vmem [#allocation0], 64
    %v87 = vld [vmem:[%s86] ss:$8 sm:$0xf]
    %s88 = scalar_lea.vmem [#allocation0], 64
    %v89 = vld [vmem:[%s88] ss:$8 sm:$0xf0]
    %vm90 = vcmask 1047556
    %v91 = vsel %vm90, %v89, %v87
    %vm92 = vcmask 162816
    %s93 = scalar_lea.vmem %s1, 8
    %94 = vst.msk [vmem:[%s93] sm:$0xff] %vm92, %v91
    %s95 = scalar_lea.vmem [#allocation0], 1
    %v96 = vld [vmem:[%s95] ss:$8 sm:$0xf]
    %s97 = scalar_lea.vmem [#allocation0], 1
    %v98 = vld [vmem:[%s97] ss:$8 sm:$0xf0]
    %vm99 = vcmask 1047556
    %v100 = vsel %vm99, %v98, %v96
    %101 = vrot.lane.b32.xlu0 %v100, 20
    %v102 = vpop.permute.xlu0 %101
    %vm103 = vcmask 326816
    %104 = vst.msk [vmem:[%s1] sm:$0xff] %vm103, %v102
    %s105 = scalar_lea.vmem [#allocation0], 65
    %v106 = vld [vmem:[%s105] ss:$8 sm:$0xf]
    %s107 = scalar_lea.vmem [#allocation0], 65
    %v108 = vld [vmem:[%s107] ss:$8 sm:$0xf0]
    %vm109 = vcmask 1047556
    %v110 = vsel %vm109, %v108, %v106
    %111 = vrot.lane.b32.xlu0 %v110, 20
    %v112 = vpop.permute.xlu0 %111
    %vm113 = vcmask 326816
    %s114 = scalar_lea.vmem %s1, 8
    %115 = vst.msk [vmem:[%s114] sm:$0xff] %vm113, %v112

// kernel: wavelet_block_apply.1
$region0: #{wavelet_block_apply.1}
  #allocation0 [shape = 'u32[]', space=smem, size = 0x4, offset = 0x4, fixed_abs, tag = 'smem constant byte address 0x4 - core index']
  #allocation1 [shape = 'u32[144,128]{1,0:T(1,128)}', space=vmem, size = 0x12000, scoped, tag = 'internal scratch']
  #allocation2 [shape = 'f32[20,40]{1,0:T(8,128)}', space=vmem, size = 0x3000, scoped, tag = 'scratch operand']
  %s0 = inlined_call_operand.vmem [shape: f32[25], index: 0, kind: input, shape index: {}]
  %s1 = inlined_call_operand.vmem [shape: f32[16,36], index: 1, kind: input, shape index: {}]
  %s2 = inlined_call_operand.vmem [shape: f32[2,16,16], index: 2, kind: input, shape index: {}]
  %s3 = inlined_call_operand.hbm [shape: f32[2,16,16], index: 3, kind: output, shape index: {}]
  %s4 = sld [smem:[#allocation0]]
  $region26: #{wavelet_block_apply.1} parent=0
    _
  %s6 = ssub.s32 1, %s4
  %s7 = scalar_select 0, %s6, %s4
  $region1: #{wavelet_block_apply.1} parent=0
    #allocation3 [shape = 'u8[512]{0}', space=smem, size = 0x200, scoped, tag = 'input window, operand 0, single buffered']
    #allocation4 [shape = 's32[1]{0}', space=sflag, size = 0x4, scoped, tag = 'scoped memory for wavelet_block_apply.1']
    #allocation5 [shape = 's32[1]{0}', space=sflag, size = 0x4, scoped, tag = 'scoped memory for wavelet_block_apply.1']
    #allocation6 [shape = 'u8[16384]{0}', space=vmem, size = 0x4000, scoped, tag = 'output window, operand 0, single buffered']
    %8 = vsyncpa [#allocation5], 0
    %9 = vsyncpa [#allocation4], 0
    // Predicated region
    $region2: #{wavelet_block_apply.1} parent=1 // pred_check
      _
    $region3: #{wavelet_block_apply.1} parent=1 // pred_check_branch
      %11 = sbr.rel (0) target = $region5
    $region4: #{wavelet_block_apply.1} parent=1 // pred_region
      %s13 = ssub.s32 16, 16
      %14 = vsyncadd [#allocation5], %s13
      %s16 = sshll.u32 %s0, 4
      %s17 = int_to_ptr.vmem [resolvable:$true] %s16
      %19 = dma.vmem_to_smem %s17, 16, [#allocation3], [#allocation5]
    $region5: #{wavelet_block_apply.1} parent=1 // pred_fallthru
      _
    // Predicated region
    $region6: #{wavelet_block_apply.1} parent=1 // pred_check
      _
    $region7: #{wavelet_block_apply.1} parent=1 // pred_check_branch
      %21 = sbr.rel (0) target = $region9
    $region8: #{wavelet_block_apply.1} parent=1 // pred_region
      _
    $region9: #{wavelet_block_apply.1} parent=1 // pred_fallthru
      _
    // Predicated region
    $region10: #{wavelet_block_apply.1} parent=1 // pred_check
      _
    $region11: #{wavelet_block_apply.1} parent=1 // pred_check_branch
      %23 = sbr.rel (0) target = $region13
    $region12: #{wavelet_block_apply.1} parent=1 // pred_region
      _
    $region13: #{wavelet_block_apply.1} parent=1 // pred_fallthru
      _
    // Predicated region
    $region14: #{wavelet_block_apply.1} parent=1 // pred_check
      _
    $region15: #{wavelet_block_apply.1} parent=1 // pred_check_branch
      %25 = sbr.rel (0) target = $region17
    $region16: #{wavelet_block_apply.1} parent=1 // pred_region
      %26 = dma.done [#allocation5], 16
    $region17: #{wavelet_block_apply.1} parent=1 // pred_fallthru
      _
    %27 = sfence
    %vm28 = vcmask 326656
    %29 = vst.msk [vmem:[#allocation2] sm:$0xff] %vm28, 0.0
    %30 = vst.msk [vmem:[#allocation2 + $0x8] sm:$0xff] %vm28, 0.0
    %vm31 = vcmask 322560
    %32 = vst.msk [vmem:[#allocation2 + $0x10] sm:$0xf] %vm31, 0.0
    %v33 = vld [vmem:[%s2] sm:$0xff]
    %v34 = vld [vmem:[%s2 + $0x8] sm:$0xff]
    %37 = vrot.lane.b32.xlu0 %v33, 2
    %v38 = vpop.permute.xlu0 %37
    %39 = vrot.lane.b32.xlu0 %v34, 2
    %v40 = vpop.permute.xlu0 %39
    %vm43 = vcmask 146448
    %44 = vst.msk [vmem:[#allocation2 + $0x2] sm:$0xff] %vm43, %v38
    %45 = vst.msk [vmem:[#allocation2 + $0xa] sm:$0xff] %vm43, %v40
    %s46 = scalar_lea.vmem %s2, 16
    %v47 = vld [vmem:[%s46] sm:$0xff]
    %v48 = vld [vmem:[%s46 + $0x8] sm:$0xff]
    %51 = vrot.lane.b32.xlu0 %v47, 22
    %v52 = vpop.permute.xlu0 %51
    %53 = vrot.lane.b32.xlu0 %v48, 22
    %v54 = vpop.permute.xlu0 %53
    %vm57 = vcmask 310448
    %58 = vst.msk [vmem:[#allocation2 + $0x2] sm:$0xff] %vm57, %v52
    %59 = vst.msk [vmem:[#allocation2 + $0xa] sm:$0xff] %vm57, %v54
    %v60 = vld [vmem:[#allocation2] sm:$0xff]
    %v61 = vld [vmem:[#allocation2 + $0x8] sm:$0xff]
    %v62 = vld [vmem:[#allocation2 + $0x10] sm:$0xf]
    %v63 = vld [vmem:[%s1] sm:$0xff]
    %v64 = vld [vmem:[%s1 + $0x8] sm:$0xff]
    %s65 = sld [smem:[#allocation3]]
    %v66 = vstv %s65
    %v67 = vmul.f32 %v66, %v60
    %v68 = vmul.f32 %v66, %v61
    %v69 = vadd.f32 %v63, %v67
    %v70 = vadd.f32 %v64, %v68
    %s71 = sld [smem:[#allocation3 + $0x1]]
    %v72 = vstv %s71
    %v73 = vmul.f32 %v72, %v60
    %v74 = vmul.f32 %v72, %v61
    %77 = vrot.lane.b32.xlu0 %v73, 127
    %v78 = vpop.permute.xlu0 %77
    %79 = vrot.lane.b32.xlu0 %v74, 127
    %v80 = vpop.permute.xlu0 %79
    %v83 = vadd.f32 %v69, %v78
    %v84 = vadd.f32 %v70, %v80
    %s85 = sld [smem:[#allocation3 + $0x2]]
    %v86 = vstv %s85
    %v87 = vmul.f32 %v86, %v60
    %v88 = vmul.f32 %v86, %v61
    %91 = vrot.lane.b32.xlu0 %v87, 126
    %v92 = vpop.permute.xlu0 %91
    %93 = vrot.lane.b32.xlu0 %v88, 126
    %v94 = vpop.permute.xlu0 %93
    %v97 = vadd.f32 %v83, %v92
    %v98 = vadd.f32 %v84, %v94
    %s99 = sld [smem:[#allocation3 + $0x3]]
    %v100 = vstv %s99
    %v101 = vmul.f32 %v100, %v60
    %v102 = vmul.f32 %v100, %v61
    %105 = vrot.lane.b32.xlu0 %v101, 125
    %v106 = vpop.permute.xlu0 %105
    %107 = vrot.lane.b32.xlu0 %v102, 125
    %v108 = vpop.permute.xlu0 %107
    %v111 = vadd.f32 %v97, %v106
    %v112 = vadd.f32 %v98, %v108
    %s113 = sld [smem:[#allocation3 + $0x4]]
    %v114 = vstv %s113
    %v115 = vmul.f32 %v114, %v60
    %v116 = vmul.f32 %v114, %v61
    %119 = vrot.lane.b32.xlu0 %v115, 124
    %v120 = vpop.permute.xlu0 %119
    %121 = vrot.lane.b32.xlu0 %v116, 124
    %v122 = vpop.permute.xlu0 %121
    %v125 = vadd.f32 %v111, %v120
    %v126 = vadd.f32 %v112, %v122
    %s127 = sld [smem:[#allocation3 + $0x5]]
    %v128 = vstv %s127
    %v129 = vmul.f32 %v128, %v60
    %v130 = vmul.f32 %v128, %v61
    %v131 = vmul.f32 %v128, %v62
    %vm135 = vcmask 1046528
    %v136 = vrot.slane %v129, 1
    %v137 = vrot.slane %v130, 1
    %v138 = vsel %vm135, %v136, %v137
    %v139 = vrot.slane %v131, 1
    %v140 = vsel %vm135, %v137, %v139
    %v143 = vadd.f32 %v125, %v138
    %v144 = vadd.f32 %v126, %v140
    %s145 = sld [smem:[#allocation3 + $0x6]]
    %v146 = vstv %s145
    %v147 = vmul.f32 %v146, %v60
    %v148 = vmul.f32 %v146, %v61
    %v149 = vmul.f32 %v146, %v62
    %v153 = vrot.slane %v147, 1
    %v154 = vrot.slane %v148, 1
    %v155 = vsel %vm135, %v153, %v154
    %v156 = vrot.slane %v149, 1
    %v157 = vsel %vm135, %v154, %v156
    %158 = vrot.lane.b32.xlu0 %v155, 127
    %v159 = vpop.permute.xlu0 %158
    %160 = vrot.lane.b32.xlu0 %v157, 127
    %v161 = vpop.permute.xlu0 %160
    %v164 = vadd.f32 %v143, %v159
    %v165 = vadd.f32 %v144, %v161
    %s166 = sld [smem:[#allocation3 + $0x7]]
    %v167 = vstv %s166
    %v168 = vmul.f32 %v167, %v60
    %v169 = vmul.f32 %v167, %v61
    %v170 = vmul.f32 %v167, %v62
    %v174 = vrot.slane %v168, 1
    %v175 = vrot.slane %v169, 1
    %v176 = vsel %vm135, %v174, %v175
    %v177 = vrot.slane %v170, 1
    %v178 = vsel %vm135, %v175, %v177
    %179 = vrot.lane.b32.xlu0 %v176, 126
    %v180 = vpop.permute.xlu0 %179
    %181 = vrot.lane.b32.xlu0 %v178, 126
    %v182 = vpop.permute.xlu0 %181
    %v185 = vadd.f32 %v164, %v180
    %v186 = vadd.f32 %v165, %v182
    %s187 = sld [smem:[#allocation3 + $0x8]]
    %v188 = vstv %s187
    %v189 = vmul.f32 %v188, %v60
    %v190 = vmul.f32 %v188, %v61
    %v191 = vmul.f32 %v188, %v62
    %v195 = vrot.slane %v189, 1
    %v196 = vrot.slane %v190, 1
    %v197 = vsel %vm135, %v195, %v196
    %v198 = vrot.slane %v191, 1
    %v199 = vsel %vm135, %v196, %v198
    %200 = vrot.lane.b32.xlu0 %v197, 125
    %v201 = vpop.permute.xlu0 %200
    %202 = vrot.lane.b32.xlu0 %v199, 125
    %v203 = vpop.permute.xlu0 %202
    %v206 = vadd.f32 %v185, %v201
    %v207 = vadd.f32 %v186, %v203
    %s208 = sld [smem:[#allocation3 + $0x9]]
    %v209 = vstv %s208
    %v210 = vmul.f32 %v209, %v60
    %v211 = vmul.f32 %v209, %v61
    %v212 = vmul.f32 %v209, %v62
    %v216 = vrot.slane %v210, 1
    %v217 = vrot.slane %v211, 1
    %v218 = vsel %vm135, %v216, %v217
    %v219 = vrot.slane %v212, 1
    %v220 = vsel %vm135, %v217, %v219
    %221 = vrot.lane.b32.xlu0 %v218, 124
    %v222 = vpop.permute.xlu0 %221
    %223 = vrot.lane.b32.xlu0 %v220, 124
    %v224 = vpop.permute.xlu0 %223
    %v227 = vadd.f32 %v206, %v222
    %v228 = vadd.f32 %v207, %v224
    %s229 = sld [smem:[#allocation3 + $0xa]]
    %v230 = vstv %s229
    %v231 = vmul.f32 %v230, %v60
    %v232 = vmul.f32 %v230, %v61
    %v233 = vmul.f32 %v230, %v62
    %vm237 = vcmask 1045504
    %v238 = vrot.slane %v231, 2
    %v239 = vrot.slane %v232, 2
    %v240 = vsel %vm237, %v238, %v239
    %v241 = vrot.slane %v233, 2
    %v242 = vsel %vm237, %v239, %v241
    %v245 = vadd.f32 %v227, %v240
    %v246 = vadd.f32 %v228, %v242
    %s247 = sld [smem:[#allocation3 + $0xb]]
    %v248 = vstv %s247
    %v249 = vmul.f32 %v248, %v60
    %v250 = vmul.f32 %v248, %v61
    %v251 = vmul.f32 %v248, %v62
    %v255 = vrot.slane %v249, 2
    %v256 = vrot.slane %v250, 2
    %v257 = vsel %vm237, %v255, %v256
    %v258 = vrot.slane %v251, 2
    %v259 = vsel %vm237, %v256, %v258
    %260 = vrot.lane.b32.xlu0 %v257, 127
    %v261 = vpop.permute.xlu0 %260
    %262 = vrot.lane.b32.xlu0 %v259, 127
    %v263 = vpop.permute.xlu0 %262
    %v266 = vadd.f32 %v245, %v261
    %v267 = vadd.f32 %v246, %v263
    %s268 = sld [smem:[#allocation3 + $0xc]]
    %v269 = vstv %s268
    %v270 = vmul.f32 %v269, %v60
    %v271 = vmul.f32 %v269, %v61
    %v272 = vmul.f32 %v269, %v62
    %v276 = vrot.slane %v270, 2
    %v277 = vrot.slane %v271, 2
    %v278 = vsel %vm237, %v276, %v277
    %v279 = vrot.slane %v272, 2
    %v280 = vsel %vm237, %v277, %v279
    %281 = vrot.lane.b32.xlu0 %v278, 126
    %v282 = vpop.permute.xlu0 %281
    %283 = vrot.lane.b32.xlu0 %v280, 126
    %v284 = vpop.permute.xlu0 %283
    %v287 = vadd.f32 %v266, %v282
    %v288 = vadd.f32 %v267, %v284
    %s289 = sld [smem:[#allocation3 + $0xd]]
    %v290 = vstv %s289
    %v291 = vmul.f32 %v290, %v60
    %v292 = vmul.f32 %v290, %v61
    %v293 = vmul.f32 %v290, %v62
    %v297 = vrot.slane %v291, 2
    %v298 = vrot.slane %v292, 2
    %v299 = vsel %vm237, %v297, %v298
    %v300 = vrot.slane %v293, 2
    %v301 = vsel %vm237, %v298, %v300
    %302 = vrot.lane.b32.xlu0 %v299, 125
    %v303 = vpop.permute.xlu0 %302
    %304 = vrot.lane.b32.xlu0 %v301, 125
    %v305 = vpop.permute.xlu0 %304
    %v308 = vadd.f32 %v287, %v303
    %v309 = vadd.f32 %v288, %v305
    %s310 = sld [smem:[#allocation3 + $0xe]]
    %v311 = vstv %s310
    %v312 = vmul.f32 %v311, %v60
    %v313 = vmul.f32 %v311, %v61
    %v314 = vmul.f32 %v311, %v62
    %v318 = vrot.slane %v312, 2
    %v319 = vrot.slane %v313, 2
    %v320 = vsel %vm237, %v318, %v319
    %v321 = vrot.slane %v314, 2
    %v322 = vsel %vm237, %v319, %v321
    %323 = vrot.lane.b32.xlu0 %v320, 124
    %v324 = vpop.permute.xlu0 %323
    %325 = vrot.lane.b32.xlu0 %v322, 124
    %v326 = vpop.permute.xlu0 %325
    %v329 = vadd.f32 %v308, %v324
    %v330 = vadd.f32 %v309, %v326
    %s331 = sld [smem:[#allocation3 + $0xf]]
    %v332 = vstv %s331
    %v333 = vmul.f32 %v332, %v60
    %v334 = vmul.f32 %v332, %v61
    %v335 = vmul.f32 %v332, %v62
    %vm339 = vcmask 1044480
    %v340 = vrot.slane %v333, 3
    %v341 = vrot.slane %v334, 3
    %v342 = vsel %vm339, %v340, %v341
    %v343 = vrot.slane %v335, 3
    %v344 = vsel %vm339, %v341, %v343
    %v347 = vadd.f32 %v329, %v342
    %v348 = vadd.f32 %v330, %v344
    %s349 = sld [smem:[#allocation3 + $0x10]]
    %v350 = vstv %s349
    %v351 = vmul.f32 %v350, %v60
    %v352 = vmul.f32 %v350, %v61
    %v353 = vmul.f32 %v350, %v62
    %v357 = vrot.slane %v351, 3
    %v358 = vrot.slane %v352, 3
    %v359 = vsel %vm339, %v357, %v358
    %v360 = vrot.slane %v353, 3
    %v361 = vsel %vm339, %v358, %v360
    %362 = vrot.lane.b32.xlu0 %v359, 127
    %v363 = vpop.permute.xlu0 %362
    %364 = vrot.lane.b32.xlu0 %v361, 127
    %v365 = vpop.permute.xlu0 %364
    %v368 = vadd.f32 %v347, %v363
    %v369 = vadd.f32 %v348, %v365
    %s370 = sld [smem:[#allocation3 + $0x11]]
    %v371 = vstv %s370
    %v372 = vmul.f32 %v371, %v60
    %v373 = vmul.f32 %v371, %v61
    %v374 = vmul.f32 %v371, %v62
    %v378 = vrot.slane %v372, 3
    %v379 = vrot.slane %v373, 3
    %v380 = vsel %vm339, %v378, %v379
    %v381 = vrot.slane %v374, 3
    %v382 = vsel %vm339, %v379, %v381
    %383 = vrot.lane.b32.xlu0 %v380, 126
    %v384 = vpop.permute.xlu0 %383
    %385 = vrot.lane.b32.xlu0 %v382, 126
    %v386 = vpop.permute.xlu0 %385
    %v389 = vadd.f32 %v368, %v384
    %v390 = vadd.f32 %v369, %v386
    %s391 = sld [smem:[#allocation3 + $0x12]]
    %v392 = vstv %s391
    %v393 = vmul.f32 %v392, %v60
    %v394 = vmul.f32 %v392, %v61
    %v395 = vmul.f32 %v392, %v62
    %v399 = vrot.slane %v393, 3
    %v400 = vrot.slane %v394, 3
    %v401 = vsel %vm339, %v399, %v400
    %v402 = vrot.slane %v395, 3
    %v403 = vsel %vm339, %v400, %v402
    %404 = vrot.lane.b32.xlu0 %v401, 125
    %v405 = vpop.permute.xlu0 %404
    %406 = vrot.lane.b32.xlu0 %v403, 125
    %v407 = vpop.permute.xlu0 %406
    %v410 = vadd.f32 %v389, %v405
    %v411 = vadd.f32 %v390, %v407
    %s412 = sld [smem:[#allocation3 + $0x13]]
    %v413 = vstv %s412
    %v414 = vmul.f32 %v413, %v60
    %v415 = vmul.f32 %v413, %v61
    %v416 = vmul.f32 %v413, %v62
    %v420 = vrot.slane %v414, 3
    %v421 = vrot.slane %v415, 3
    %v422 = vsel %vm339, %v420, %v421
    %v423 = vrot.slane %v416, 3
    %v424 = vsel %vm339, %v421, %v423
    %425 = vrot.lane.b32.xlu0 %v422, 124
    %v426 = vpop.permute.xlu0 %425
    %427 = vrot.lane.b32.xlu0 %v424, 124
    %v428 = vpop.permute.xlu0 %427
    %v431 = vadd.f32 %v410, %v426
    %v432 = vadd.f32 %v411, %v428
    %s433 = sld [smem:[#allocation3 + $0x14]]
    %v434 = vstv %s433
    %v435 = vmul.f32 %v434, %v60
    %v436 = vmul.f32 %v434, %v61
    %v437 = vmul.f32 %v434, %v62
    %vm441 = vcmask 1043456
    %v442 = vrot.slane %v435, 4
    %v443 = vrot.slane %v436, 4
    %v444 = vsel %vm441, %v442, %v443
    %v445 = vrot.slane %v437, 4
    %v446 = vsel %vm441, %v443, %v445
    %v449 = vadd.f32 %v431, %v444
    %v450 = vadd.f32 %v432, %v446
    %s451 = sld [smem:[#allocation3 + $0x15]]
    %v452 = vstv %s451
    %v453 = vmul.f32 %v452, %v60
    %v454 = vmul.f32 %v452, %v61
    %v455 = vmul.f32 %v452, %v62
    %v459 = vrot.slane %v453, 4
    %v460 = vrot.slane %v454, 4
    %v461 = vsel %vm441, %v459, %v460
    %v462 = vrot.slane %v455, 4
    %v463 = vsel %vm441, %v460, %v462
    %464 = vrot.lane.b32.xlu0 %v461, 127
    %v465 = vpop.permute.xlu0 %464
    %466 = vrot.lane.b32.xlu0 %v463, 127
    %v467 = vpop.permute.xlu0 %466
    %v470 = vadd.f32 %v449, %v465
    %v471 = vadd.f32 %v450, %v467
    %s472 = sld [smem:[#allocation3 + $0x16]]
    %v473 = vstv %s472
    %v474 = vmul.f32 %v473, %v60
    %v475 = vmul.f32 %v473, %v61
    %v476 = vmul.f32 %v473, %v62
    %v480 = vrot.slane %v474, 4
    %v481 = vrot.slane %v475, 4
    %v482 = vsel %vm441, %v480, %v481
    %v483 = vrot.slane %v476, 4
    %v484 = vsel %vm441, %v481, %v483
    %485 = vrot.lane.b32.xlu0 %v482, 126
    %v486 = vpop.permute.xlu0 %485
    %487 = vrot.lane.b32.xlu0 %v484, 126
    %v488 = vpop.permute.xlu0 %487
    %v491 = vadd.f32 %v470, %v486
    %v492 = vadd.f32 %v471, %v488
    %s493 = sld [smem:[#allocation3 + $0x17]]
    %v494 = vstv %s493
    %v495 = vmul.f32 %v494, %v60
    %v496 = vmul.f32 %v494, %v61
    %v497 = vmul.f32 %v494, %v62
    %v501 = vrot.slane %v495, 4
    %v502 = vrot.slane %v496, 4
    %v503 = vsel %vm441, %v501, %v502
    %v504 = vrot.slane %v497, 4
    %v505 = vsel %vm441, %v502, %v504
    %506 = vrot.lane.b32.xlu0 %v503, 125
    %v507 = vpop.permute.xlu0 %506
    %508 = vrot.lane.b32.xlu0 %v505, 125
    %v509 = vpop.permute.xlu0 %508
    %v512 = vadd.f32 %v491, %v507
    %v513 = vadd.f32 %v492, %v509
    %s514 = sld [smem:[#allocation3 + $0x18]]
    %v515 = vstv %s514
    %v516 = vmul.f32 %v515, %v60
    %v517 = vmul.f32 %v515, %v61
    %v518 = vmul.f32 %v515, %v62
    %v522 = vrot.slane %v516, 4
    %v523 = vrot.slane %v517, 4
    %v524 = vsel %vm441, %v522, %v523
    %v525 = vrot.slane %v518, 4
    %v526 = vsel %vm441, %v523, %v525
    %527 = vrot.lane.b32.xlu0 %v524, 124
    %v528 = vpop.permute.xlu0 %527
    %529 = vrot.lane.b32.xlu0 %v526, 124
    %v530 = vpop.permute.xlu0 %529
    %v533 = vadd.f32 %v512, %v528
    %v534 = vadd.f32 %v513, %v530
    %vm535 = vcmask 130048
    %536 = vst.msk [vmem:[#allocation6] sm:$0xff] %vm535, %v533
    %537 = vst.msk [vmem:[#allocation6 + $0x8] sm:$0xff] %vm535, %v534
    %540 = vrot.lane.b32.xlu0 %v533, 108
    %v541 = vpop.permute.xlu0 %540
    %542 = vrot.lane.b32.xlu0 %v534, 108
    %v543 = vpop.permute.xlu0 %542
    %s546 = scalar_lea.vmem [#allocation6], 16
    %547 = vst.msk [vmem:[%s546] sm:$0xff] %vm535, %v541
    %548 = vst.msk [vmem:[%s546 + $0x8] sm:$0xff] %vm535, %v543
    // Predicated region
    $region18: #{wavelet_block_apply.1} parent=1 // pred_check
      _
    $region19: #{wavelet_block_apply.1} parent=1 // pred_check_branch
      %550 = sbr.rel (0) target = $region21
    $region20: #{wavelet_block_apply.1} parent=1 // pred_region
      %s552 = ssub.s32 512, 512
      %553 = vsyncadd [#allocation4], %s552
      %s554 = sshll.u32 [#allocation6], 4
      %s555 = int_to_ptr.vmem [resolvable:$true] %s554
      %560 = dma.vmem_to_hbm [thread:$0]  %s555, 512, %s3, [#allocation4], 128, 128, 8
    $region21: #{wavelet_block_apply.1} parent=1 // pred_fallthru
      _
    // Predicated region
    $region22: #{wavelet_block_apply.1} parent=1 // pred_check
      _
    $region23: #{wavelet_block_apply.1} parent=1 // pred_check_branch
      %562 = sbr.rel (0) target = $region25
    $region24: #{wavelet_block_apply.1} parent=1 // pred_region
      %563 = dma.done [#allocation4], 512
    $region25: #{wavelet_block_apply.1} parent=1 // pred_fallthru
      _
    %564 = vsyncpa [#allocation4], 1
    %565 = vsyncpa [#allocation5], 1

</llo_original>
